<compile_context>
chip_gen: v7x
topology: tpu7x:2x2x1
jax: 0.10.0
libtpu: 0.0.40
codegen_flags: <defaults>
</compile_context>

<pallas_src>
import functools

import jax
import jax.numpy as jnp
from jax.experimental import pallas as pl
from jax.experimental.pallas import tpu as pltpu


def _decoder_kernel(emb_ref,    # VMEM (T, H)   bf16 -- pre-gathered embedding rows
                    h0_ref,     # VMEM (1, H)   f32  -- initial hidden
                    wih_ref,    # VMEM (H, 3H)  bf16 -- fused W_ih (r|z|n), pre-transposed
                    whh_ref,    # VMEM (H, 3H)  bf16 -- fused W_hh (r|z|n), pre-transposed
                    bi_ref,     # VMEM (1, 3H)  f32  -- [b_ir+b_hr | b_iz+b_hz | b_in]
                    bhn_ref,    # VMEM (1, H)   f32  -- b_hn (scaled by r)
                    wout_ref,   # VMEM (H, Vp)  bf16 -- out proj, zero-padded cols
                    bout_ref,   # VMEM (1, Vp)  f32  -- out bias, -1e30 in padded cols
                    logp_ref,   # OUT  (T, Vp)  f32  -- per-step log-probs
                    hout_ref):  # OUT  (1, H)   f32  -- final hidden
    H = h0_ref.shape[-1]
    T = emb_ref.shape[0]

    # ---- Hoisted, recurrence-independent input compute ---------------------
    # relu over all T embedded inputs, then one (T,H)x(H,3H) MXU pass.
    x = jnp.maximum(emb_ref[...], 0)                                 # (T, H) bf16
    gi_all = jnp.dot(x, wih_ref[...],
                     preferred_element_type=jnp.float32) + bi_ref[...]  # (T,3H) f32

    whh = whh_ref[...]                                               # (H, 3H) bf16
    bhn = bhn_ref[...]                                               # (1, H)  f32

    # ---- Serial GRU recurrence: only h @ W_hh is on the critical path ------
    # T is small & static -> full unroll; hidden carried in vregs, not VMEM.
    h = h0_ref[...].astype(jnp.float32)                              # (1, H) f32
    hs = []
    for t in range(T):
        gi = gi_all[t:t + 1, :]                                      # (1, 3H) f32
        gh = jnp.dot(h.astype(jnp.bfloat16), whh,
                     preferred_element_type=jnp.float32)             # (1, 3H) f32
        r = jax.nn.sigmoid(gi[:, :H] + gh[:, :H])
        z = jax.nn.sigmoid(gi[:, H:2 * H] + gh[:, H:2 * H])
        n = jnp.tanh(gi[:, 2 * H:] + r * (gh[:, 2 * H:] + bhn))
        h = (1.0 - z) * n + z * h                                    # (1, H) f32
        hs.append(h)

    hs_all = jnp.concatenate(hs, axis=0)                             # (T, H) f32

    # ---- Batched output projection + log_softmax over all T steps ----------
    logits = jnp.dot(hs_all.astype(jnp.bfloat16), wout_ref[...],
                     preferred_element_type=jnp.float32) + bout_ref[...]  # (T, Vp)
    m = jnp.max(logits, axis=-1, keepdims=True)
    shifted = logits - m
    lse = jnp.log(jnp.sum(jnp.exp(shifted), axis=-1, keepdims=True))
    logp_ref[...] = shifted - lse                                    # dense (T, Vp) store

    hout_ref[...] = h                                                # written once


@functools.lru_cache(maxsize=None)
def _make_decode_call(T, H, Vp):
    vmem = pl.BlockSpec(memory_space=pltpu.MemorySpace.VMEM)
    return pl.pallas_call(
        _decoder_kernel,
        out_shape=(
            jax.ShapeDtypeStruct((T, Vp), jnp.float32),
            jax.ShapeDtypeStruct((1, H), jnp.float32),
        ),
        in_specs=[vmem] * 8,        # whole arrays VMEM-resident; no grid, no pipeline
        out_specs=(vmem, vmem),
    )


def init_params(key, hidden_size, output_size):
    """Kernel-ready parameters mirroring nn.Embedding / nn.GRU / nn.Linear init.

    GRU weights are stored transposed & concatenated per gate (r|z|n) so the
    kernel computes x @ W; r/z biases are pre-summed; matmul weights in bf16;
    the output projection is padded to a lane-dense vocab width.
    """
    H, V = hidden_size, output_size
    Vp = ((V + 127) // 128) * 128
    ks = jax.random.split(key, 7)
    k = 1.0 / jnp.sqrt(H)

    emb   = jax.random.normal(ks[0], (V, H), jnp.float32)              # nn.Embedding
    w_ih  = jax.random.uniform(ks[1], (3, H, H), jnp.float32, -k, k)   # per-gate, pre-transposed
    w_hh  = jax.random.uniform(ks[2], (3, H, H), jnp.float32, -k, k)
    b_ih  = jax.random.uniform(ks[3], (3, H), jnp.float32, -k, k)
    b_hh  = jax.random.uniform(ks[4], (3, H), jnp.float32, -k, k)
    w_out = jax.random.uniform(ks[5], (H, V), jnp.float32, -k, k)      # nn.Linear weight^T
    b_out = jax.random.uniform(ks[6], (V,), jnp.float32, -k, k)

    w_ih_all = jnp.concatenate([w_ih[0], w_ih[1], w_ih[2]], axis=1)    # (H, 3H)
    w_hh_all = jnp.concatenate([w_hh[0], w_hh[1], w_hh[2]], axis=1)    # (H, 3H)
    b_i_all = jnp.concatenate(
        [b_ih[0] + b_hh[0], b_ih[1] + b_hh[1], b_ih[2]], axis=0).reshape(1, 3 * H)
    b_h_n = b_hh[2].reshape(1, H)

    w_out_p = jnp.zeros((H, Vp), jnp.float32).at[:, :V].set(w_out)
    b_out_p = jnp.full((1, Vp), -1e30, jnp.float32).at[0, :V].set(b_out)

    return {
        "embedding": emb.astype(jnp.bfloat16),       # (V, H)
        "w_ih_all": w_ih_all.astype(jnp.bfloat16),   # (H, 3H)
        "w_hh_all": w_hh_all.astype(jnp.bfloat16),   # (H, 3H)
        "b_i_all": b_i_all,                          # (1, 3H) f32
        "b_h_n": b_h_n,                              # (1, H)  f32
        "w_out_p": w_out_p.astype(jnp.bfloat16),     # (H, Vp)
        "b_out_p": b_out_p,                          # (1, Vp) f32
    }


@jax.jit
def decoder_rnn_decode(params, tokens, hidden0):
    """Run T teacher-forced decoder steps in a single fused Pallas call.

    tokens:  (T,) int32 word indices
    hidden0: (1, 1, H) f32 initial hidden state
    Returns (log_probs (T, V) f32, final_hidden (1, H) f32).
    """
    H = hidden0.shape[-1]
    V = params["embedding"].shape[0]
    Vp = params["w_out_p"].shape[-1]
    T = tokens.shape[0]

    # Bulk embedding-row gather in the wrapper (one lookup, not T tiny DMAs).
    emb_rows = jnp.take(params["embedding"], tokens.astype(jnp.int32), axis=0)  # (T, H) bf16

    call = _make_decode_call(T, H, Vp)
    h0 = hidden0.reshape(1, H).astype(jnp.float32)
    logp_p, h_final = call(
        emb_rows, h0,
        params["w_ih_all"], params["w_hh_all"],
        params["b_i_all"], params["b_h_n"],
        params["w_out_p"], params["b_out_p"])
    return logp_p[:, :V], h_final


def decoder_rnn_forward(params, token, hidden, encoder_outputs=None):
    """Single-step forward with the PyTorch module's signature/semantics.

    Returns (log_probs (1, V), new_hidden (1, 1, H), attention_weights=None).
    `encoder_outputs` is unused in the no-attention path (as in the module).
    """
    H = hidden.shape[-1]
    tokens = jnp.reshape(token, (1,)).astype(jnp.int32)
    logp, h_new = decoder_rnn_decode(params, tokens, hidden)
    return logp, h_new.reshape(1, 1, H), None


def _reference_decode(params, tokens, hidden0):
    """Pure-JAX per-step reference emulating the kernel numerics (bf16 weights, f32 accum)."""
    H = hidden0.shape[-1]
    V = params["embedding"].shape[0]
    emb, wih, whh = params["embedding"], params["w_ih_all"], params["w_hh_all"]
    bi, bhn = params["b_i_all"], params["b_h_n"]
    wout, bout = params["w_out_p"], params["b_out_p"]

    h = hidden0.reshape(1, H).astype(jnp.float32)
    outs = []
    for t in range(tokens.shape[0]):
        x = jnp.maximum(emb[tokens[t]].reshape(1, H), 0)
        gi = jnp.dot(x, wih, preferred_element_type=jnp.float32) + bi
        gh = jnp.dot(h.astype(jnp.bfloat16), whh, preferred_element_type=jnp.float32)
        r = jax.nn.sigmoid(gi[:, :H] + gh[:, :H])
        z = jax.nn.sigmoid(gi[:, H:2 * H] + gh[:, H:2 * H])
        n = jnp.tanh(gi[:, 2 * H:] + r * (gh[:, 2 * H:] + bhn))
        h = (1.0 - z) * n + z * h
        logits = jnp.dot(h.astype(jnp.bfloat16), wout,
                         preferred_element_type=jnp.float32) + bout
        outs.append(jax.nn.log_softmax(logits, axis=-1)[:, :V])
    return jnp.concatenate(outs, axis=0), h


if __name__ == "__main__":
    HIDDEN = 32
    VOCAB = 64     # output_size
    T = 8          # decode steps fused into one kernel launch

    key = jax.random.PRNGKey(0)
    pkey, tkey, hkey = jax.random.split(key, 3)

    params = init_params(pkey, HIDDEN, VOCAB)
    tokens = jax.random.randint(tkey, (T,), 0, VOCAB, dtype=jnp.int32)
    # initHidden() returns zeros; use small random values to exercise the GRU path
    hidden0 = 0.1 * jax.random.normal(hkey, (1, 1, HIDDEN), jnp.float32)

    # Fused multi-step decode (one pallas_call, one kernel invocation for all T steps).
    logp_seq, h_final = decoder_rnn_decode(params, tokens, hidden0)
    jax.block_until_ready((logp_seq, h_final))

    ref_logp_seq, ref_h_final = _reference_decode(params, tokens, hidden0)
    assert logp_seq.shape == (T, VOCAB)
    assert h_final.shape == (1, HIDDEN)
    assert jnp.allclose(logp_seq, ref_logp_seq, atol=2e-3, rtol=2e-3)
    assert jnp.allclose(h_final, ref_h_final, atol=2e-3, rtol=2e-3)

    # Single-step forward matching the PyTorch module's signature.
    logp1, hid1, attn = decoder_rnn_forward(params, tokens[0], hidden0)
    jax.block_until_ready((logp1, hid1))
    assert logp1.shape == (1, VOCAB)
    assert hid1.shape == (1, 1, HIDDEN)
    assert attn is None
    assert jnp.allclose(logp1, ref_logp_seq[0:1], atol=2e-3, rtol=2e-3)

    print("KERNEL_OK")
</pallas_src>

<mosaic_0001>
module attributes {stable_mosaic.version = 11 : i64} {
  func.func @_decoder_kernel(%arg0: memref<8x32xbf16, #tpu.memory_space<vmem>>, %arg1: memref<1x32xf32, #tpu.memory_space<vmem>>, %arg2: memref<32x96xbf16, #tpu.memory_space<vmem>>, %arg3: memref<32x96xbf16, #tpu.memory_space<vmem>>, %arg4: memref<1x96xf32, #tpu.memory_space<vmem>>, %arg5: memref<1x32xf32, #tpu.memory_space<vmem>>, %arg6: memref<32x128xbf16, #tpu.memory_space<vmem>>, %arg7: memref<1x128xf32, #tpu.memory_space<vmem>>, %arg8: memref<8x128xf32, #tpu.memory_space<vmem>>, %arg9: memref<1x32xf32, #tpu.memory_space<vmem>>) attributes {dimension_semantics = [], scalar_prefetch = 0 : i64, scratch_operands = 0 : i64, tpu.core_type = #tpu.core_type<tc>} {
    %c0 = arith.constant 0 : index
    %c0_0 = arith.constant 0 : index
    %0 = vector.load %arg0[%c0, %c0_0] : memref<8x32xbf16, #tpu.memory_space<vmem>>, vector<8x32xbf16>
    %cst = arith.constant 0.000000e+00 : bf16
    %1 = vector.broadcast %cst : bf16 to vector<8x32xbf16>
    %2 = arith.maximumf %0, %1 : vector<8x32xbf16>
    %c0_1 = arith.constant 0 : index
    %c0_2 = arith.constant 0 : index
    %3 = vector.load %arg2[%c0_1, %c0_2] : memref<32x96xbf16, #tpu.memory_space<vmem>>, vector<32x96xbf16>
    %cst_3 = arith.constant dense<0.000000e+00> : vector<8x96xf32>
    %4 = tpu.matmul %2, %3, %cst_3 {dimension_numbers = #tpu.dot_dimension_numbers<[1], [0], [0], [1], [0, 0, 1, 1], [], []>} : vector<8x32xbf16>, vector<32x96xbf16>, vector<8x96xf32> -> vector<8x96xf32>
    %c0_4 = arith.constant 0 : index
    %c0_5 = arith.constant 0 : index
    %5 = vector.load %arg4[%c0_4, %c0_5] : memref<1x96xf32, #tpu.memory_space<vmem>>, vector<1x96xf32>
    %6 = vector.broadcast %5 : vector<1x96xf32> to vector<8x96xf32>
    %7 = arith.addf %4, %6 : vector<8x96xf32>
    %c0_6 = arith.constant 0 : index
    %c0_7 = arith.constant 0 : index
    %8 = vector.load %arg3[%c0_6, %c0_7] : memref<32x96xbf16, #tpu.memory_space<vmem>>, vector<32x96xbf16>
    %c0_8 = arith.constant 0 : index
    %c0_9 = arith.constant 0 : index
    %9 = vector.load %arg5[%c0_8, %c0_9] : memref<1x32xf32, #tpu.memory_space<vmem>>, vector<1x32xf32>
    %c0_10 = arith.constant 0 : index
    %c0_11 = arith.constant 0 : index
    %10 = vector.load %arg1[%c0_10, %c0_11] : memref<1x32xf32, #tpu.memory_space<vmem>>, vector<1x32xf32>
    %11 = vector.extract_strided_slice %7 {offsets = [0, 0], sizes = [1, 96], strides = [1, 1]} : vector<8x96xf32> to vector<1x96xf32>
    %12 = arith.truncf %10 : vector<1x32xf32> to vector<1x32xbf16>
    %cst_12 = arith.constant dense<0.000000e+00> : vector<1x96xf32>
    %13 = tpu.matmul %12, %8, %cst_12 {dimension_numbers = #tpu.dot_dimension_numbers<[1], [0], [0], [1], [0, 0, 1, 1], [], []>} : vector<1x32xbf16>, vector<32x96xbf16>, vector<1x96xf32> -> vector<1x96xf32>
    %14 = vector.extract_strided_slice %11 {offsets = [0, 0], sizes = [1, 32], strides = [1, 1]} : vector<1x96xf32> to vector<1x32xf32>
    %15 = vector.extract_strided_slice %13 {offsets = [0, 0], sizes = [1, 32], strides = [1, 1]} : vector<1x96xf32> to vector<1x32xf32>
    %16 = arith.addf %14, %15 : vector<1x32xf32>
    %17 = arith.negf %16 : vector<1x32xf32>
    %18 = math.exp %17 : vector<1x32xf32>
    %cst_13 = arith.constant 1.000000e+00 : f32
    %19 = vector.broadcast %cst_13 : f32 to vector<1x32xf32>
    %20 = arith.addf %19, %18 : vector<1x32xf32>
    %21 = arith.divf %19, %20 : vector<1x32xf32>
    %22 = vector.extract_strided_slice %11 {offsets = [0, 32], sizes = [1, 32], strides = [1, 1]} : vector<1x96xf32> to vector<1x32xf32>
    %23 = vector.extract_strided_slice %13 {offsets = [0, 32], sizes = [1, 32], strides = [1, 1]} : vector<1x96xf32> to vector<1x32xf32>
    %24 = arith.addf %22, %23 : vector<1x32xf32>
    %25 = arith.negf %24 : vector<1x32xf32>
    %26 = math.exp %25 : vector<1x32xf32>
    %cst_14 = arith.constant 1.000000e+00 : f32
    %27 = vector.broadcast %cst_14 : f32 to vector<1x32xf32>
    %28 = arith.addf %27, %26 : vector<1x32xf32>
    %29 = arith.divf %27, %28 : vector<1x32xf32>
    %30 = vector.extract_strided_slice %11 {offsets = [0, 64], sizes = [1, 32], strides = [1, 1]} : vector<1x96xf32> to vector<1x32xf32>
    %31 = vector.extract_strided_slice %13 {offsets = [0, 64], sizes = [1, 32], strides = [1, 1]} : vector<1x96xf32> to vector<1x32xf32>
    %32 = arith.addf %31, %9 : vector<1x32xf32>
    %33 = arith.mulf %21, %32 : vector<1x32xf32>
    %34 = arith.addf %30, %33 : vector<1x32xf32>
    %35 = math.tanh %34 : vector<1x32xf32>
    %cst_15 = arith.constant 1.000000e+00 : f32
    %36 = vector.broadcast %cst_15 : f32 to vector<1x32xf32>
    %37 = arith.subf %36, %29 : vector<1x32xf32>
    %38 = arith.mulf %37, %35 : vector<1x32xf32>
    %39 = arith.mulf %29, %10 : vector<1x32xf32>
    %40 = arith.addf %38, %39 : vector<1x32xf32>
    %41 = vector.extract_strided_slice %7 {offsets = [1, 0], sizes = [1, 96], strides = [1, 1]} : vector<8x96xf32> to vector<1x96xf32>
    %42 = arith.truncf %40 : vector<1x32xf32> to vector<1x32xbf16>
    %cst_16 = arith.constant dense<0.000000e+00> : vector<1x96xf32>
    %43 = tpu.matmul %42, %8, %cst_16 {dimension_numbers = #tpu.dot_dimension_numbers<[1], [0], [0], [1], [0, 0, 1, 1], [], []>} : vector<1x32xbf16>, vector<32x96xbf16>, vector<1x96xf32> -> vector<1x96xf32>
    %44 = vector.extract_strided_slice %41 {offsets = [0, 0], sizes = [1, 32], strides = [1, 1]} : vector<1x96xf32> to vector<1x32xf32>
    %45 = vector.extract_strided_slice %43 {offsets = [0, 0], sizes = [1, 32], strides = [1, 1]} : vector<1x96xf32> to vector<1x32xf32>
    %46 = arith.addf %44, %45 : vector<1x32xf32>
    %47 = arith.negf %46 : vector<1x32xf32>
    %48 = math.exp %47 : vector<1x32xf32>
    %cst_17 = arith.constant 1.000000e+00 : f32
    %49 = vector.broadcast %cst_17 : f32 to vector<1x32xf32>
    %50 = arith.addf %49, %48 : vector<1x32xf32>
    %51 = arith.divf %49, %50 : vector<1x32xf32>
    %52 = vector.extract_strided_slice %41 {offsets = [0, 32], sizes = [1, 32], strides = [1, 1]} : vector<1x96xf32> to vector<1x32xf32>
    %53 = vector.extract_strided_slice %43 {offsets = [0, 32], sizes = [1, 32], strides = [1, 1]} : vector<1x96xf32> to vector<1x32xf32>
    %54 = arith.addf %52, %53 : vector<1x32xf32>
    %55 = arith.negf %54 : vector<1x32xf32>
    %56 = math.exp %55 : vector<1x32xf32>
    %cst_18 = arith.constant 1.000000e+00 : f32
    %57 = vector.broadcast %cst_18 : f32 to vector<1x32xf32>
    %58 = arith.addf %57, %56 : vector<1x32xf32>
    %59 = arith.divf %57, %58 : vector<1x32xf32>
    %60 = vector.extract_strided_slice %41 {offsets = [0, 64], sizes = [1, 32], strides = [1, 1]} : vector<1x96xf32> to vector<1x32xf32>
    %61 = vector.extract_strided_slice %43 {offsets = [0, 64], sizes = [1, 32], strides = [1, 1]} : vector<1x96xf32> to vector<1x32xf32>
    %62 = arith.addf %61, %9 : vector<1x32xf32>
    %63 = arith.mulf %51, %62 : vector<1x32xf32>
    %64 = arith.addf %60, %63 : vector<1x32xf32>
    %65 = math.tanh %64 : vector<1x32xf32>
    %cst_19 = arith.constant 1.000000e+00 : f32
    %66 = vector.broadcast %cst_19 : f32 to vector<1x32xf32>
    %67 = arith.subf %66, %59 : vector<1x32xf32>
    %68 = arith.mulf %67, %65 : vector<1x32xf32>
    %69 = arith.mulf %59, %40 : vector<1x32xf32>
    %70 = arith.addf %68, %69 : vector<1x32xf32>
    %71 = vector.extract_strided_slice %7 {offsets = [2, 0], sizes = [1, 96], strides = [1, 1]} : vector<8x96xf32> to vector<1x96xf32>
    %72 = arith.truncf %70 : vector<1x32xf32> to vector<1x32xbf16>
    %cst_20 = arith.constant dense<0.000000e+00> : vector<1x96xf32>
    %73 = tpu.matmul %72, %8, %cst_20 {dimension_numbers = #tpu.dot_dimension_numbers<[1], [0], [0], [1], [0, 0, 1, 1], [], []>} : vector<1x32xbf16>, vector<32x96xbf16>, vector<1x96xf32> -> vector<1x96xf32>
    %74 = vector.extract_strided_slice %71 {offsets = [0, 0], sizes = [1, 32], strides = [1, 1]} : vector<1x96xf32> to vector<1x32xf32>
    %75 = vector.extract_strided_slice %73 {offsets = [0, 0], sizes = [1, 32], strides = [1, 1]} : vector<1x96xf32> to vector<1x32xf32>
    %76 = arith.addf %74, %75 : vector<1x32xf32>
    %77 = arith.negf %76 : vector<1x32xf32>
    %78 = math.exp %77 : vector<1x32xf32>
    %cst_21 = arith.constant 1.000000e+00 : f32
    %79 = vector.broadcast %cst_21 : f32 to vector<1x32xf32>
    %80 = arith.addf %79, %78 : vector<1x32xf32>
    %81 = arith.divf %79, %80 : vector<1x32xf32>
    %82 = vector.extract_strided_slice %71 {offsets = [0, 32], sizes = [1, 32], strides = [1, 1]} : vector<1x96xf32> to vector<1x32xf32>
    %83 = vector.extract_strided_slice %73 {offsets = [0, 32], sizes = [1, 32], strides = [1, 1]} : vector<1x96xf32> to vector<1x32xf32>
    %84 = arith.addf %82, %83 : vector<1x32xf32>
    %85 = arith.negf %84 : vector<1x32xf32>
    %86 = math.exp %85 : vector<1x32xf32>
    %cst_22 = arith.constant 1.000000e+00 : f32
    %87 = vector.broadcast %cst_22 : f32 to vector<1x32xf32>
    %88 = arith.addf %87, %86 : vector<1x32xf32>
    %89 = arith.divf %87, %88 : vector<1x32xf32>
    %90 = vector.extract_strided_slice %71 {offsets = [0, 64], sizes = [1, 32], strides = [1, 1]} : vector<1x96xf32> to vector<1x32xf32>
    %91 = vector.extract_strided_slice %73 {offsets = [0, 64], sizes = [1, 32], strides = [1, 1]} : vector<1x96xf32> to vector<1x32xf32>
    %92 = arith.addf %91, %9 : vector<1x32xf32>
    %93 = arith.mulf %81, %92 : vector<1x32xf32>
    %94 = arith.addf %90, %93 : vector<1x32xf32>
    %95 = math.tanh %94 : vector<1x32xf32>
    %cst_23 = arith.constant 1.000000e+00 : f32
    %96 = vector.broadcast %cst_23 : f32 to vector<1x32xf32>
    %97 = arith.subf %96, %89 : vector<1x32xf32>
    %98 = arith.mulf %97, %95 : vector<1x32xf32>
    %99 = arith.mulf %89, %70 : vector<1x32xf32>
    %100 = arith.addf %98, %99 : vector<1x32xf32>
    %101 = vector.extract_strided_slice %7 {offsets = [3, 0], sizes = [1, 96], strides = [1, 1]} : vector<8x96xf32> to vector<1x96xf32>
    %102 = arith.truncf %100 : vector<1x32xf32> to vector<1x32xbf16>
    %cst_24 = arith.constant dense<0.000000e+00> : vector<1x96xf32>
    %103 = tpu.matmul %102, %8, %cst_24 {dimension_numbers = #tpu.dot_dimension_numbers<[1], [0], [0], [1], [0, 0, 1, 1], [], []>} : vector<1x32xbf16>, vector<32x96xbf16>, vector<1x96xf32> -> vector<1x96xf32>
    %104 = vector.extract_strided_slice %101 {offsets = [0, 0], sizes = [1, 32], strides = [1, 1]} : vector<1x96xf32> to vector<1x32xf32>
    %105 = vector.extract_strided_slice %103 {offsets = [0, 0], sizes = [1, 32], strides = [1, 1]} : vector<1x96xf32> to vector<1x32xf32>
    %106 = arith.addf %104, %105 : vector<1x32xf32>
    %107 = arith.negf %106 : vector<1x32xf32>
    %108 = math.exp %107 : vector<1x32xf32>
    %cst_25 = arith.constant 1.000000e+00 : f32
    %109 = vector.broadcast %cst_25 : f32 to vector<1x32xf32>
    %110 = arith.addf %109, %108 : vector<1x32xf32>
    %111 = arith.divf %109, %110 : vector<1x32xf32>
    %112 = vector.extract_strided_slice %101 {offsets = [0, 32], sizes = [1, 32], strides = [1, 1]} : vector<1x96xf32> to vector<1x32xf32>
    %113 = vector.extract_strided_slice %103 {offsets = [0, 32], sizes = [1, 32], strides = [1, 1]} : vector<1x96xf32> to vector<1x32xf32>
    %114 = arith.addf %112, %113 : vector<1x32xf32>
    %115 = arith.negf %114 : vector<1x32xf32>
    %116 = math.exp %115 : vector<1x32xf32>
    %cst_26 = arith.constant 1.000000e+00 : f32
    %117 = vector.broadcast %cst_26 : f32 to vector<1x32xf32>
    %118 = arith.addf %117, %116 : vector<1x32xf32>
    %119 = arith.divf %117, %118 : vector<1x32xf32>
    %120 = vector.extract_strided_slice %101 {offsets = [0, 64], sizes = [1, 32], strides = [1, 1]} : vector<1x96xf32> to vector<1x32xf32>
    %121 = vector.extract_strided_slice %103 {offsets = [0, 64], sizes = [1, 32], strides = [1, 1]} : vector<1x96xf32> to vector<1x32xf32>
    %122 = arith.addf %121, %9 : vector<1x32xf32>
    %123 = arith.mulf %111, %122 : vector<1x32xf32>
    %124 = arith.addf %120, %123 : vector<1x32xf32>
    %125 = math.tanh %124 : vector<1x32xf32>
    %cst_27 = arith.constant 1.000000e+00 : f32
    %126 = vector.broadcast %cst_27 : f32 to vector<1x32xf32>
    %127 = arith.subf %126, %119 : vector<1x32xf32>
    %128 = arith.mulf %127, %125 : vector<1x32xf32>
    %129 = arith.mulf %119, %100 : vector<1x32xf32>
    %130 = arith.addf %128, %129 : vector<1x32xf32>
    %131 = vector.extract_strided_slice %7 {offsets = [4, 0], sizes = [1, 96], strides = [1, 1]} : vector<8x96xf32> to vector<1x96xf32>
    %132 = arith.truncf %130 : vector<1x32xf32> to vector<1x32xbf16>
    %cst_28 = arith.constant dense<0.000000e+00> : vector<1x96xf32>
    %133 = tpu.matmul %132, %8, %cst_28 {dimension_numbers = #tpu.dot_dimension_numbers<[1], [0], [0], [1], [0, 0, 1, 1], [], []>} : vector<1x32xbf16>, vector<32x96xbf16>, vector<1x96xf32> -> vector<1x96xf32>
    %134 = vector.extract_strided_slice %131 {offsets = [0, 0], sizes = [1, 32], strides = [1, 1]} : vector<1x96xf32> to vector<1x32xf32>
    %135 = vector.extract_strided_slice %133 {offsets = [0, 0], sizes = [1, 32], strides = [1, 1]} : vector<1x96xf32> to vector<1x32xf32>
    %136 = arith.addf %134, %135 : vector<1x32xf32>
    %137 = arith.negf %136 : vector<1x32xf32>
    %138 = math.exp %137 : vector<1x32xf32>
    %cst_29 = arith.constant 1.000000e+00 : f32
    %139 = vector.broadcast %cst_29 : f32 to vector<1x32xf32>
    %140 = arith.addf %139, %138 : vector<1x32xf32>
    %141 = arith.divf %139, %140 : vector<1x32xf32>
    %142 = vector.extract_strided_slice %131 {offsets = [0, 32], sizes = [1, 32], strides = [1, 1]} : vector<1x96xf32> to vector<1x32xf32>
    %143 = vector.extract_strided_slice %133 {offsets = [0, 32], sizes = [1, 32], strides = [1, 1]} : vector<1x96xf32> to vector<1x32xf32>
    %144 = arith.addf %142, %143 : vector<1x32xf32>
    %145 = arith.negf %144 : vector<1x32xf32>
    %146 = math.exp %145 : vector<1x32xf32>
    %cst_30 = arith.constant 1.000000e+00 : f32
    %147 = vector.broadcast %cst_30 : f32 to vector<1x32xf32>
    %148 = arith.addf %147, %146 : vector<1x32xf32>
    %149 = arith.divf %147, %148 : vector<1x32xf32>
    %150 = vector.extract_strided_slice %131 {offsets = [0, 64], sizes = [1, 32], strides = [1, 1]} : vector<1x96xf32> to vector<1x32xf32>
    %151 = vector.extract_strided_slice %133 {offsets = [0, 64], sizes = [1, 32], strides = [1, 1]} : vector<1x96xf32> to vector<1x32xf32>
    %152 = arith.addf %151, %9 : vector<1x32xf32>
    %153 = arith.mulf %141, %152 : vector<1x32xf32>
    %154 = arith.addf %150, %153 : vector<1x32xf32>
    %155 = math.tanh %154 : vector<1x32xf32>
    %cst_31 = arith.constant 1.000000e+00 : f32
    %156 = vector.broadcast %cst_31 : f32 to vector<1x32xf32>
    %157 = arith.subf %156, %149 : vector<1x32xf32>
    %158 = arith.mulf %157, %155 : vector<1x32xf32>
    %159 = arith.mulf %149, %130 : vector<1x32xf32>
    %160 = arith.addf %158, %159 : vector<1x32xf32>
    %161 = vector.extract_strided_slice %7 {offsets = [5, 0], sizes = [1, 96], strides = [1, 1]} : vector<8x96xf32> to vector<1x96xf32>
    %162 = arith.truncf %160 : vector<1x32xf32> to vector<1x32xbf16>
    %cst_32 = arith.constant dense<0.000000e+00> : vector<1x96xf32>
    %163 = tpu.matmul %162, %8, %cst_32 {dimension_numbers = #tpu.dot_dimension_numbers<[1], [0], [0], [1], [0, 0, 1, 1], [], []>} : vector<1x32xbf16>, vector<32x96xbf16>, vector<1x96xf32> -> vector<1x96xf32>
    %164 = vector.extract_strided_slice %161 {offsets = [0, 0], sizes = [1, 32], strides = [1, 1]} : vector<1x96xf32> to vector<1x32xf32>
    %165 = vector.extract_strided_slice %163 {offsets = [0, 0], sizes = [1, 32], strides = [1, 1]} : vector<1x96xf32> to vector<1x32xf32>
    %166 = arith.addf %164, %165 : vector<1x32xf32>
    %167 = arith.negf %166 : vector<1x32xf32>
    %168 = math.exp %167 : vector<1x32xf32>
    %cst_33 = arith.constant 1.000000e+00 : f32
    %169 = vector.broadcast %cst_33 : f32 to vector<1x32xf32>
    %170 = arith.addf %169, %168 : vector<1x32xf32>
    %171 = arith.divf %169, %170 : vector<1x32xf32>
    %172 = vector.extract_strided_slice %161 {offsets = [0, 32], sizes = [1, 32], strides = [1, 1]} : vector<1x96xf32> to vector<1x32xf32>
    %173 = vector.extract_strided_slice %163 {offsets = [0, 32], sizes = [1, 32], strides = [1, 1]} : vector<1x96xf32> to vector<1x32xf32>
    %174 = arith.addf %172, %173 : vector<1x32xf32>
    %175 = arith.negf %174 : vector<1x32xf32>
    %176 = math.exp %175 : vector<1x32xf32>
    %cst_34 = arith.constant 1.000000e+00 : f32
    %177 = vector.broadcast %cst_34 : f32 to vector<1x32xf32>
    %178 = arith.addf %177, %176 : vector<1x32xf32>
    %179 = arith.divf %177, %178 : vector<1x32xf32>
    %180 = vector.extract_strided_slice %161 {offsets = [0, 64], sizes = [1, 32], strides = [1, 1]} : vector<1x96xf32> to vector<1x32xf32>
    %181 = vector.extract_strided_slice %163 {offsets = [0, 64], sizes = [1, 32], strides = [1, 1]} : vector<1x96xf32> to vector<1x32xf32>
    %182 = arith.addf %181, %9 : vector<1x32xf32>
    %183 = arith.mulf %171, %182 : vector<1x32xf32>
    %184 = arith.addf %180, %183 : vector<1x32xf32>
    %185 = math.tanh %184 : vector<1x32xf32>
    %cst_35 = arith.constant 1.000000e+00 : f32
    %186 = vector.broadcast %cst_35 : f32 to vector<1x32xf32>
    %187 = arith.subf %186, %179 : vector<1x32xf32>
    %188 = arith.mulf %187, %185 : vector<1x32xf32>
    %189 = arith.mulf %179, %160 : vector<1x32xf32>
    %190 = arith.addf %188, %189 : vector<1x32xf32>
    %191 = vector.extract_strided_slice %7 {offsets = [6, 0], sizes = [1, 96], strides = [1, 1]} : vector<8x96xf32> to vector<1x96xf32>
    %192 = arith.truncf %190 : vector<1x32xf32> to vector<1x32xbf16>
    %cst_36 = arith.constant dense<0.000000e+00> : vector<1x96xf32>
    %193 = tpu.matmul %192, %8, %cst_36 {dimension_numbers = #tpu.dot_dimension_numbers<[1], [0], [0], [1], [0, 0, 1, 1], [], []>} : vector<1x32xbf16>, vector<32x96xbf16>, vector<1x96xf32> -> vector<1x96xf32>
    %194 = vector.extract_strided_slice %191 {offsets = [0, 0], sizes = [1, 32], strides = [1, 1]} : vector<1x96xf32> to vector<1x32xf32>
    %195 = vector.extract_strided_slice %193 {offsets = [0, 0], sizes = [1, 32], strides = [1, 1]} : vector<1x96xf32> to vector<1x32xf32>
    %196 = arith.addf %194, %195 : vector<1x32xf32>
    %197 = arith.negf %196 : vector<1x32xf32>
    %198 = math.exp %197 : vector<1x32xf32>
    %cst_37 = arith.constant 1.000000e+00 : f32
    %199 = vector.broadcast %cst_37 : f32 to vector<1x32xf32>
    %200 = arith.addf %199, %198 : vector<1x32xf32>
    %201 = arith.divf %199, %200 : vector<1x32xf32>
    %202 = vector.extract_strided_slice %191 {offsets = [0, 32], sizes = [1, 32], strides = [1, 1]} : vector<1x96xf32> to vector<1x32xf32>
    %203 = vector.extract_strided_slice %193 {offsets = [0, 32], sizes = [1, 32], strides = [1, 1]} : vector<1x96xf32> to vector<1x32xf32>
    %204 = arith.addf %202, %203 : vector<1x32xf32>
    %205 = arith.negf %204 : vector<1x32xf32>
    %206 = math.exp %205 : vector<1x32xf32>
    %cst_38 = arith.constant 1.000000e+00 : f32
    %207 = vector.broadcast %cst_38 : f32 to vector<1x32xf32>
    %208 = arith.addf %207, %206 : vector<1x32xf32>
    %209 = arith.divf %207, %208 : vector<1x32xf32>
    %210 = vector.extract_strided_slice %191 {offsets = [0, 64], sizes = [1, 32], strides = [1, 1]} : vector<1x96xf32> to vector<1x32xf32>
    %211 = vector.extract_strided_slice %193 {offsets = [0, 64], sizes = [1, 32], strides = [1, 1]} : vector<1x96xf32> to vector<1x32xf32>
    %212 = arith.addf %211, %9 : vector<1x32xf32>
    %213 = arith.mulf %201, %212 : vector<1x32xf32>
    %214 = arith.addf %210, %213 : vector<1x32xf32>
    %215 = math.tanh %214 : vector<1x32xf32>
    %cst_39 = arith.constant 1.000000e+00 : f32
    %216 = vector.broadcast %cst_39 : f32 to vector<1x32xf32>
    %217 = arith.subf %216, %209 : vector<1x32xf32>
    %218 = arith.mulf %217, %215 : vector<1x32xf32>
    %219 = arith.mulf %209, %190 : vector<1x32xf32>
    %220 = arith.addf %218, %219 : vector<1x32xf32>
    %221 = vector.extract_strided_slice %7 {offsets = [7, 0], sizes = [1, 96], strides = [1, 1]} : vector<8x96xf32> to vector<1x96xf32>
    %222 = arith.truncf %220 : vector<1x32xf32> to vector<1x32xbf16>
    %cst_40 = arith.constant dense<0.000000e+00> : vector<1x96xf32>
    %223 = tpu.matmul %222, %8, %cst_40 {dimension_numbers = #tpu.dot_dimension_numbers<[1], [0], [0], [1], [0, 0, 1, 1], [], []>} : vector<1x32xbf16>, vector<32x96xbf16>, vector<1x96xf32> -> vector<1x96xf32>
    %224 = vector.extract_strided_slice %221 {offsets = [0, 0], sizes = [1, 32], strides = [1, 1]} : vector<1x96xf32> to vector<1x32xf32>
    %225 = vector.extract_strided_slice %223 {offsets = [0, 0], sizes = [1, 32], strides = [1, 1]} : vector<1x96xf32> to vector<1x32xf32>
    %226 = arith.addf %224, %225 : vector<1x32xf32>
    %227 = arith.negf %226 : vector<1x32xf32>
    %228 = math.exp %227 : vector<1x32xf32>
    %cst_41 = arith.constant 1.000000e+00 : f32
    %229 = vector.broadcast %cst_41 : f32 to vector<1x32xf32>
    %230 = arith.addf %229, %228 : vector<1x32xf32>
    %231 = arith.divf %229, %230 : vector<1x32xf32>
    %232 = vector.extract_strided_slice %221 {offsets = [0, 32], sizes = [1, 32], strides = [1, 1]} : vector<1x96xf32> to vector<1x32xf32>
    %233 = vector.extract_strided_slice %223 {offsets = [0, 32], sizes = [1, 32], strides = [1, 1]} : vector<1x96xf32> to vector<1x32xf32>
    %234 = arith.addf %232, %233 : vector<1x32xf32>
    %235 = arith.negf %234 : vector<1x32xf32>
    %236 = math.exp %235 : vector<1x32xf32>
    %cst_42 = arith.constant 1.000000e+00 : f32
    %237 = vector.broadcast %cst_42 : f32 to vector<1x32xf32>
    %238 = arith.addf %237, %236 : vector<1x32xf32>
    %239 = arith.divf %237, %238 : vector<1x32xf32>
    %240 = vector.extract_strided_slice %221 {offsets = [0, 64], sizes = [1, 32], strides = [1, 1]} : vector<1x96xf32> to vector<1x32xf32>
    %241 = vector.extract_strided_slice %223 {offsets = [0, 64], sizes = [1, 32], strides = [1, 1]} : vector<1x96xf32> to vector<1x32xf32>
    %242 = arith.addf %241, %9 : vector<1x32xf32>
    %243 = arith.mulf %231, %242 : vector<1x32xf32>
    %244 = arith.addf %240, %243 : vector<1x32xf32>
    %245 = math.tanh %244 : vector<1x32xf32>
    %cst_43 = arith.constant 1.000000e+00 : f32
    %246 = vector.broadcast %cst_43 : f32 to vector<1x32xf32>
    %247 = arith.subf %246, %239 : vector<1x32xf32>
    %248 = arith.mulf %247, %245 : vector<1x32xf32>
    %249 = arith.mulf %239, %220 : vector<1x32xf32>
    %250 = arith.addf %248, %249 : vector<1x32xf32>
    %251 = tpu.concatenate %40, %70, %100, %130, %160, %190, %220, %250 in 0 : vector<1x32xf32>, vector<1x32xf32>, vector<1x32xf32>, vector<1x32xf32>, vector<1x32xf32>, vector<1x32xf32>, vector<1x32xf32>, vector<1x32xf32> -> vector<8x32xf32>
    %252 = arith.truncf %251 : vector<8x32xf32> to vector<8x32xbf16>
    %c0_44 = arith.constant 0 : index
    %c0_45 = arith.constant 0 : index
    %253 = vector.load %arg6[%c0_44, %c0_45] : memref<32x128xbf16, #tpu.memory_space<vmem>>, vector<32x128xbf16>
    %cst_46 = arith.constant dense<0.000000e+00> : vector<8x128xf32>
    %254 = tpu.matmul %252, %253, %cst_46 {dimension_numbers = #tpu.dot_dimension_numbers<[1], [0], [0], [1], [0, 0, 1, 1], [], []>} : vector<8x32xbf16>, vector<32x128xbf16>, vector<8x128xf32> -> vector<8x128xf32>
    %c0_47 = arith.constant 0 : index
    %c0_48 = arith.constant 0 : index
    %255 = vector.load %arg7[%c0_47, %c0_48] : memref<1x128xf32, #tpu.memory_space<vmem>>, vector<1x128xf32>
    %256 = vector.broadcast %255 : vector<1x128xf32> to vector<8x128xf32>
    %257 = arith.addf %254, %256 : vector<8x128xf32>
    %cst_49 = arith.constant dense<0xFF800000> : vector<8xf32>
    %258 = vector.multi_reduction <maximumf>, %257, %cst_49 [1] : vector<8x128xf32> to vector<8xf32>
    %259 = vector.shape_cast %258 : vector<8xf32> to vector<8x1xf32>
    %260 = vector.broadcast %259 : vector<8x1xf32> to vector<8x128xf32>
    %261 = arith.subf %257, %260 : vector<8x128xf32>
    %262 = math.exp %261 : vector<8x128xf32>
    %cst_50 = arith.constant dense<0.000000e+00> : vector<8xf32>
    %263 = vector.multi_reduction <add>, %262, %cst_50 [1] : vector<8x128xf32> to vector<8xf32>
    %264 = vector.shape_cast %263 : vector<8xf32> to vector<8x1xf32>
    %265 = math.log %264 : vector<8x1xf32>
    %266 = vector.broadcast %265 : vector<8x1xf32> to vector<8x128xf32>
    %267 = arith.subf %261, %266 : vector<8x128xf32>
    %c0_51 = arith.constant 0 : index
    %c0_52 = arith.constant 0 : index
    %268 = vector.load %arg8[%c0_51, %c0_52] : memref<8x128xf32, #tpu.memory_space<vmem>>, vector<8x128xf32>
    tpu.vector_store %arg8[%c0_51, %c0_52], %267 {strides = array<i32>} : memref<8x128xf32, #tpu.memory_space<vmem>>, vector<8x128xf32>,
    %c0_53 = arith.constant 0 : index
    %c0_54 = arith.constant 0 : index
    %269 = vector.load %arg9[%c0_53, %c0_54] : memref<1x32xf32, #tpu.memory_space<vmem>>, vector<1x32xf32>
    tpu.vector_store %arg9[%c0_53, %c0_54], %250 {strides = array<i32>} : memref<1x32xf32, #tpu.memory_space<vmem>>, vector<1x32xf32>,
    return
  }
}

</mosaic_0001>

<llo_original>
// kernel: decoder_rnn_decode.1
$region0: #{decoder_rnn_decode.1}
  #allocation0 [shape = 'u32[]', space=smem, size = 0x4, offset = 0x4, fixed_abs, tag = 'smem constant byte address 0x4 - core index']
  #allocation1 [shape = 'u32[144,128]{1,0:T(1,128)}', space=vmem, size = 0x12000, scoped, tag = 'internal scratch']
  %s0 = inlined_call_operand.vmem [shape: bf16[8,32], index: 0, kind: input, shape index: {}]
  %s1 = inlined_call_operand.vmem [shape: f32[1,32], index: 1, kind: input, shape index: {}]
  %s2 = inlined_call_operand.vmem [shape: bf16[32,96], index: 2, kind: input, shape index: {}]
  %s3 = inlined_call_operand.vmem [shape: bf16[32,96], index: 3, kind: input, shape index: {}]
  %s4 = inlined_call_operand.vmem [shape: f32[1,96], index: 4, kind: input, shape index: {}]
  %s5 = inlined_call_operand.vmem [shape: f32[1,32], index: 5, kind: input, shape index: {}]
  %s6 = inlined_call_operand.vmem [shape: bf16[32,128], index: 6, kind: input, shape index: {}]
  %s7 = inlined_call_operand.vmem [shape: f32[1,128], index: 7, kind: input, shape index: {}]
  %s8 = inlined_call_operand.hbm [shape: f32[8,128], index: 8, kind: output, shape index: {0}]
  %s9 = inlined_call_operand.hbm [shape: f32[1,32], index: 9, kind: output, shape index: {1}]
  %10 = xla_tuple %s8, %s9
  %s11 = sld [smem:[#allocation0]]
  $region50: #{decoder_rnn_decode.1} parent=0
    _
  %s13 = ssub.s32 1, %s11
  %s14 = scalar_select 0, %s13, %s11
  $region1: #{decoder_rnn_decode.1} parent=0
    #allocation2 [shape = 'u8[4096]{0}', space=vmem, size = 0x1000, scoped, tag = 'output window, operand 0, single buffered']
    #allocation3 [shape = 's32[1]{0}', space=sflag, size = 0x4, scoped, tag = 'scoped memory for decoder_rnn_decode.1']
    #allocation4 [shape = 'u8[512]{0}', space=vmem, size = 0x400, scoped, tag = 'output window, operand 1, single buffered']
    #allocation5 [shape = 's32[1]{0}', space=sflag, size = 0x4, scoped, tag = 'scoped memory for decoder_rnn_decode.1']
    %15 = vsyncpa [#allocation3], 0
    %16 = vsyncpa [#allocation5], 0
    // Predicated region
    $region2: #{decoder_rnn_decode.1} parent=1 // pred_check
      _
    $region3: #{decoder_rnn_decode.1} parent=1 // pred_check_branch
      %18 = sbr.rel (0) target = $region5
    $region4: #{decoder_rnn_decode.1} parent=1 // pred_region
      _
    $region5: #{decoder_rnn_decode.1} parent=1 // pred_fallthru
      _
    // Predicated region
    $region6: #{decoder_rnn_decode.1} parent=1 // pred_check
      _
    $region7: #{decoder_rnn_decode.1} parent=1 // pred_check_branch
      %20 = sbr.rel (0) target = $region9
    $region8: #{decoder_rnn_decode.1} parent=1 // pred_region
      _
    $region9: #{decoder_rnn_decode.1} parent=1 // pred_fallthru
      _
    // Predicated region
    $region10: #{decoder_rnn_decode.1} parent=1 // pred_check
      _
    $region11: #{decoder_rnn_decode.1} parent=1 // pred_check_branch
      %22 = sbr.rel (0) target = $region13
    $region12: #{decoder_rnn_decode.1} parent=1 // pred_region
      _
    $region13: #{decoder_rnn_decode.1} parent=1 // pred_fallthru
      _
    // Predicated region
    $region14: #{decoder_rnn_decode.1} parent=1 // pred_check
      _
    $region15: #{decoder_rnn_decode.1} parent=1 // pred_check_branch
      %24 = sbr.rel (0) target = $region17
    $region16: #{decoder_rnn_decode.1} parent=1 // pred_region
      _
    $region17: #{decoder_rnn_decode.1} parent=1 // pred_fallthru
      _
    // Predicated region
    $region18: #{decoder_rnn_decode.1} parent=1 // pred_check
      _
    $region19: #{decoder_rnn_decode.1} parent=1 // pred_check_branch
      %26 = sbr.rel (0) target = $region21
    $region20: #{decoder_rnn_decode.1} parent=1 // pred_region
      _
    $region21: #{decoder_rnn_decode.1} parent=1 // pred_fallthru
      _
    // Predicated region
    $region22: #{decoder_rnn_decode.1} parent=1 // pred_check
      _
    $region23: #{decoder_rnn_decode.1} parent=1 // pred_check_branch
      %28 = sbr.rel (0) target = $region25
    $region24: #{decoder_rnn_decode.1} parent=1 // pred_region
      _
    $region25: #{decoder_rnn_decode.1} parent=1 // pred_fallthru
      _
    // Predicated region
    $region26: #{decoder_rnn_decode.1} parent=1 // pred_check
      _
    $region27: #{decoder_rnn_decode.1} parent=1 // pred_check_branch
      %30 = sbr.rel (0) target = $region29
    $region28: #{decoder_rnn_decode.1} parent=1 // pred_region
      _
    $region29: #{decoder_rnn_decode.1} parent=1 // pred_fallthru
      _
    // Predicated region
    $region30: #{decoder_rnn_decode.1} parent=1 // pred_check
      _
    $region31: #{decoder_rnn_decode.1} parent=1 // pred_check_branch
      %32 = sbr.rel (0) target = $region33
    $region32: #{decoder_rnn_decode.1} parent=1 // pred_region
      _
    $region33: #{decoder_rnn_decode.1} parent=1 // pred_fallthru
      _
    %v34 = vld [vmem:[%s0] sm:$0xf]
    %v35 = vmax.bf16 %v34, 0
    %v36 = vld [vmem:[%s2] sm:$0xf]
    %v37 = vld [vmem:[%s2 + $0x4] sm:$0xf]
    %v38 = vld [vmem:[%s2 + $0x8] sm:$0xf]
    %v39 = vld [vmem:[%s2 + $0xc] sm:$0xf]
    %v40 = vld [vmem:[%s4] sm:$0x1]
    %v42 = vlaneseq
    %v43 = vshrl.u32 %v42, 7
    %v44 = vsub.s32 0, %v43
    %v45 = vrot.slane %v40, %v44
    %v51 = vunpack.c.l.b16 %v36
    %v52 = vunpack.c.l.b16 %v37
    %v53 = vunpack.c.l.b16 %v38
    %v54 = vunpack.c.l.b16 %v39
    %v55 = vpack.c.b16 %v52, %v51
    %v56 = vpack.c.b16 %v54, %v53
    %vm59 = vcmask 261120
    %v61 = vsel %vm59, %v35, 0
    %63 = vmatprep.subr.bf16.mxu0 0
    %64 = vmatpush1.bf16.msra.mxu0 %v55
    %65 = vmatprep.subr.bf16.mxu0 0
    %66 = vmatpush1.bf16.msra.mxu0 %v56
    %67 = vmatprep.subr.bf16.mxu0 0
    %68 = vmatpush1.bf16.msra.mxu0 0
    %69 = vmatprep.subr.bf16.mxu0 0
    %70 = vmatpush1.bf16.msra.mxu0 0
    %71 = vmatprep.subr.bf16.mxu0 0
    %72 = vmatpush1.bf16.msra.mxu0 0
    %73 = vmatprep.subr.bf16.mxu0 0
    %74 = vmatpush1.bf16.msra.mxu0 0
    %75 = vmatprep.subr.bf16.mxu0 0
    %76 = vmatpush1.bf16.msra.mxu0 0
    %77 = vmatprep.subr.bf16.mxu0 0
    %78 = vmatpush1.bf16.msra.mxu0 0
    %79 = vmatprep.subr.bf16.mxu0 0
    %80 = vmatpush1.bf16.msra.mxu0 0
    %81 = vmatprep.subr.bf16.mxu0 0
    %82 = vmatpush1.bf16.msra.mxu0 0
    %83 = vmatprep.subr.bf16.mxu0 0
    %84 = vmatpush1.bf16.msra.mxu0 0
    %85 = vmatprep.subr.bf16.mxu0 0
    %86 = vmatpush1.bf16.msra.mxu0 0
    %87 = vmatprep.subr.bf16.mxu0 0
    %88 = vmatpush1.bf16.msra.mxu0 0
    %89 = vmatprep.subr.bf16.mxu0 0
    %90 = vmatpush1.bf16.msra.mxu0 0
    %91 = vmatprep.subr.bf16.mxu0 0
    %92 = vmatpush1.bf16.msra.mxu0 0
    %93 = vmatprep.subr.bf16.mxu0 0
    %94 = vmatpush1.bf16.msra.mxu0 0
    %95 = vmatprep.mubr.bf16.mxu0 0
    %96 = vmatmul.mubr.bf16.gmra.mrb[0].mxu0 %v61
    %v97 = vpop.f32.mrb[0].mxu0
    %v98 = vadd.f32 %v45, %v97
    %v99 = vpop.f32.mrb[0].mxu0
    %v100 = vpop.f32.mrb[0].mxu0
    %v101 = vpop.f32.mrb[0].mxu0
    %102 = vdwg.mxu0
    %v103 = vld [vmem:[%s3] sm:$0xf]
    %v104 = vld [vmem:[%s3 + $0x4] sm:$0xf]
    %v105 = vld [vmem:[%s3 + $0x8] sm:$0xf]
    %v106 = vld [vmem:[%s3 + $0xc] sm:$0xf]
    %v107 = vld [vmem:[%s5] sm:$0x1]
    %v108 = vld [vmem:[%s1] sm:$0x1]
    %v109 = vpack.c.bf16 %v108, %v108
    %v114 = vunpack.c.l.b16 %v103
    %v115 = vunpack.c.l.b16 %v104
    %v116 = vunpack.c.l.b16 %v105
    %v117 = vunpack.c.l.b16 %v106
    %v118 = vpack.c.b16 %v115, %v114
    %v119 = vpack.c.b16 %v117, %v116
    %v123 = vsel %vm59, %v109, 0
    %125 = vmatprep.subr.bf16.mxu0 0
    %126 = vmatpush1.bf16.msra.mxu0 %v118
    %127 = vmatprep.subr.bf16.mxu0 0
    %128 = vmatpush1.bf16.msra.mxu0 %v119
    %129 = vmatprep.subr.bf16.mxu0 0
    %130 = vmatpush1.bf16.msra.mxu0 0
    %131 = vmatprep.subr.bf16.mxu0 0
    %132 = vmatpush1.bf16.msra.mxu0 0
    %133 = vmatprep.subr.bf16.mxu0 0
    %134 = vmatpush1.bf16.msra.mxu0 0
    %135 = vmatprep.subr.bf16.mxu0 0
    %136 = vmatpush1.bf16.msra.mxu0 0
    %137 = vmatprep.subr.bf16.mxu0 0
    %138 = vmatpush1.bf16.msra.mxu0 0
    %139 = vmatprep.subr.bf16.mxu0 0
    %140 = vmatpush1.bf16.msra.mxu0 0
    %141 = vmatprep.subr.bf16.mxu0 0
    %142 = vmatpush1.bf16.msra.mxu0 0
    %143 = vmatprep.subr.bf16.mxu0 0
    %144 = vmatpush1.bf16.msra.mxu0 0
    %145 = vmatprep.subr.bf16.mxu0 0
    %146 = vmatpush1.bf16.msra.mxu0 0
    %147 = vmatprep.subr.bf16.mxu0 0
    %148 = vmatpush1.bf16.msra.mxu0 0
    %149 = vmatprep.subr.bf16.mxu0 0
    %150 = vmatpush1.bf16.msra.mxu0 0
    %151 = vmatprep.subr.bf16.mxu0 0
    %152 = vmatpush1.bf16.msra.mxu0 0
    %153 = vmatprep.subr.bf16.mxu0 0
    %154 = vmatpush1.bf16.msra.mxu0 0
    %155 = vmatprep.subr.bf16.mxu0 0
    %156 = vmatpush1.bf16.msra.mxu0 0
    %157 = vmatprep.mubr.bf16.mxu0 0
    %158 = vmatmul.mubr.bf16.gmra.mrb[0].mxu0 %v123
    %v159 = vpop.f32.mrb[0].mxu0
    %v160 = vadd.f32 0.0, %v159
    %v161 = vpop.f32.mrb[0].mxu0
    %v162 = vpop.f32.mrb[0].mxu0
    %v163 = vpop.f32.mrb[0].mxu0
    %164 = vdwg.mxu0
    %v165 = vadd.f32 %v98, %v160
    %v166 = vxor.u32 %v165, 2147483648
    %v167 = vmul.f32 %v166, 1.442695
    %v168 = vpow.pop %v167
    %v169 = vadd.f32 %v168, 1.0
    %v170 = vrcp.pop %v169
    %v171 = vmul.f32 1.0, %v170
    %v173 = vlaneseq
    %v174 = vshrl.u32 %v173, 7
    %v175 = vsub.s32 0, %v174
    %v176 = vrot.slane %v107, %v175
    %177 = vrot.lane.b32.xlu0 %v176, 64
    %v178 = vpop.permute.xlu0 %177
    %v180 = vadd.f32 %v160, %v178
    %182 = vrot.lane.b32.xlu0 %v180, 64
    %v183 = vpop.permute.xlu0 %182
    %v185 = vmul.f32 %v171, %v183
    %187 = vrot.lane.b32.xlu0 %v185, 64
    %v188 = vpop.permute.xlu0 %187
    %v190 = vadd.f32 %v98, %v188
    %v191 = vtanh.pop %v190
    %v192 = vsub.f32 1.0, %v171
    %194 = vrot.lane.b32.xlu0 %v191, 96
    %v195 = vpop.permute.xlu0 %194
    %v197 = vmul.f32 %v192, %v195
    %v199 = vlaneseq
    %v200 = vshrl.u32 %v199, 7
    %v201 = vsub.s32 0, %v200
    %v202 = vrot.slane %v108, %v201
    %203 = vrot.lane.b32.xlu0 %v202, 32
    %v204 = vpop.permute.xlu0 %203
    %v206 = vmul.f32 %v171, %v204
    %v207 = vadd.f32 %v197, %v206
    %v208 = vpack.c.bf16 %v207, %v207
    %210 = vrot.lane.b32.xlu0 %v208, 96
    %v211 = vpop.permute.xlu0 %210
    %v213 = vsel %vm59, %v211, 0
    %215 = vmatprep.subr.bf16.mxu0 0
    %216 = vmatpush1.bf16.msra.mxu0 %v118
    %217 = vmatprep.subr.bf16.mxu0 0
    %218 = vmatpush1.bf16.msra.mxu0 %v119
    %219 = vmatprep.subr.bf16.mxu0 0
    %220 = vmatpush1.bf16.msra.mxu0 0
    %221 = vmatprep.subr.bf16.mxu0 0
    %222 = vmatpush1.bf16.msra.mxu0 0
    %223 = vmatprep.subr.bf16.mxu0 0
    %224 = vmatpush1.bf16.msra.mxu0 0
    %225 = vmatprep.subr.bf16.mxu0 0
    %226 = vmatpush1.bf16.msra.mxu0 0
    %227 = vmatprep.subr.bf16.mxu0 0
    %228 = vmatpush1.bf16.msra.mxu0 0
    %229 = vmatprep.subr.bf16.mxu0 0
    %230 = vmatpush1.bf16.msra.mxu0 0
    %231 = vmatprep.subr.bf16.mxu0 0
    %232 = vmatpush1.bf16.msra.mxu0 0
    %233 = vmatprep.subr.bf16.mxu0 0
    %234 = vmatpush1.bf16.msra.mxu0 0
    %235 = vmatprep.subr.bf16.mxu0 0
    %236 = vmatpush1.bf16.msra.mxu0 0
    %237 = vmatprep.subr.bf16.mxu0 0
    %238 = vmatpush1.bf16.msra.mxu0 0
    %239 = vmatprep.subr.bf16.mxu0 0
    %240 = vmatpush1.bf16.msra.mxu0 0
    %241 = vmatprep.subr.bf16.mxu0 0
    %242 = vmatpush1.bf16.msra.mxu0 0
    %243 = vmatprep.subr.bf16.mxu0 0
    %244 = vmatpush1.bf16.msra.mxu0 0
    %245 = vmatprep.subr.bf16.mxu0 0
    %246 = vmatpush1.bf16.msra.mxu0 0
    %247 = vmatprep.mubr.bf16.mxu0 0
    %248 = vmatmul.mubr.bf16.gmra.mrb[0].mxu0 %v213
    %v249 = vpop.f32.mrb[0].mxu0
    %v250 = vadd.f32 0.0, %v249
    %v251 = vpop.f32.mrb[0].mxu0
    %v252 = vpop.f32.mrb[0].mxu0
    %v253 = vpop.f32.mrb[0].mxu0
    %254 = vdwg.mxu0
    %v256 = vrot.slane %v250, 7
    %v258 = vadd.f32 %v98, %v256
    %v259 = vxor.u32 %v258, 2147483648
    %v260 = vmul.f32 %v259, 1.442695
    %v261 = vpow.pop %v260
    %v262 = vadd.f32 %v261, 1.0
    %v263 = vrcp.pop %v262
    %v264 = vmul.f32 1.0, %v263
    %v265 = vadd.f32 %v250, %v178
    %v267 = vrot.slane %v265, 7
    %268 = vrot.lane.b32.xlu0 %v267, 64
    %v269 = vpop.permute.xlu0 %268
    %v271 = vmul.f32 %v264, %v269
    %273 = vrot.lane.b32.xlu0 %v271, 64
    %v274 = vpop.permute.xlu0 %273
    %v276 = vadd.f32 %v98, %v274
    %v277 = vtanh.pop %v276
    %v278 = vsub.f32 1.0, %v264
    %280 = vrot.lane.b32.xlu0 %v277, 96
    %v281 = vpop.permute.xlu0 %280
    %v283 = vmul.f32 %v278, %v281
    %v285 = vrot.slane %v207, 7
    %v287 = vmul.f32 %v264, %v285
    %v288 = vadd.f32 %v283, %v287
    %v289 = vpack.c.bf16 %v288, %v288
    %v291 = vshrl.u32 %v289, 16
    %293 = vrot.lane.b32.xlu0 %v291, 96
    %v294 = vpop.permute.xlu0 %293
    %v296 = vsel %vm59, %v294, 0
    %298 = vmatprep.subr.bf16.mxu0 0
    %299 = vmatpush1.bf16.msra.mxu0 %v118
    %300 = vmatprep.subr.bf16.mxu0 0
    %301 = vmatpush1.bf16.msra.mxu0 %v119
    %302 = vmatprep.subr.bf16.mxu0 0
    %303 = vmatpush1.bf16.msra.mxu0 0
    %304 = vmatprep.subr.bf16.mxu0 0
    %305 = vmatpush1.bf16.msra.mxu0 0
    %306 = vmatprep.subr.bf16.mxu0 0
    %307 = vmatpush1.bf16.msra.mxu0 0
    %308 = vmatprep.subr.bf16.mxu0 0
    %309 = vmatpush1.bf16.msra.mxu0 0
    %310 = vmatprep.subr.bf16.mxu0 0
    %311 = vmatpush1.bf16.msra.mxu0 0
    %312 = vmatprep.subr.bf16.mxu0 0
    %313 = vmatpush1.bf16.msra.mxu0 0
    %314 = vmatprep.subr.bf16.mxu0 0
    %315 = vmatpush1.bf16.msra.mxu0 0
    %316 = vmatprep.subr.bf16.mxu0 0
    %317 = vmatpush1.bf16.msra.mxu0 0
    %318 = vmatprep.subr.bf16.mxu0 0
    %319 = vmatpush1.bf16.msra.mxu0 0
    %320 = vmatprep.subr.bf16.mxu0 0
    %321 = vmatpush1.bf16.msra.mxu0 0
    %322 = vmatprep.subr.bf16.mxu0 0
    %323 = vmatpush1.bf16.msra.mxu0 0
    %324 = vmatprep.subr.bf16.mxu0 0
    %325 = vmatpush1.bf16.msra.mxu0 0
    %326 = vmatprep.subr.bf16.mxu0 0
    %327 = vmatpush1.bf16.msra.mxu0 0
    %328 = vmatprep.subr.bf16.mxu0 0
    %329 = vmatpush1.bf16.msra.mxu0 0
    %330 = vmatprep.mubr.bf16.mxu0 0
    %331 = vmatmul.mubr.bf16.gmra.mrb[0].mxu0 %v296
    %v332 = vpop.f32.mrb[0].mxu0
    %v333 = vadd.f32 0.0, %v332
    %v334 = vpop.f32.mrb[0].mxu0
    %v335 = vpop.f32.mrb[0].mxu0
    %v336 = vpop.f32.mrb[0].mxu0
    %337 = vdwg.mxu0
    %v339 = vrot.slane %v333, 6
    %v341 = vadd.f32 %v98, %v339
    %v342 = vxor.u32 %v341, 2147483648
    %v343 = vmul.f32 %v342, 1.442695
    %v344 = vpow.pop %v343
    %v345 = vadd.f32 %v344, 1.0
    %v346 = vrcp.pop %v345
    %v347 = vmul.f32 1.0, %v346
    %v348 = vadd.f32 %v333, %v178
    %v350 = vrot.slane %v348, 6
    %351 = vrot.lane.b32.xlu0 %v350, 64
    %v352 = vpop.permute.xlu0 %351
    %v354 = vmul.f32 %v347, %v352
    %356 = vrot.lane.b32.xlu0 %v354, 64
    %v357 = vpop.permute.xlu0 %356
    %v359 = vadd.f32 %v98, %v357
    %v360 = vtanh.pop %v359
    %v361 = vsub.f32 1.0, %v347
    %363 = vrot.lane.b32.xlu0 %v360, 96
    %v364 = vpop.permute.xlu0 %363
    %v366 = vmul.f32 %v361, %v364
    %v368 = vrot.slane %v288, 7
    %v370 = vmul.f32 %v347, %v368
    %v371 = vadd.f32 %v366, %v370
    %v372 = vpack.c.bf16 %v371, %v371
    %v374 = vrot.slane %v372, 1
    %375 = vrot.lane.b32.xlu0 %v374, 96
    %v376 = vpop.permute.xlu0 %375
    %v378 = vsel %vm59, %v376, 0
    %380 = vmatprep.subr.bf16.mxu0 0
    %381 = vmatpush1.bf16.msra.mxu0 %v118
    %382 = vmatprep.subr.bf16.mxu0 0
    %383 = vmatpush1.bf16.msra.mxu0 %v119
    %384 = vmatprep.subr.bf16.mxu0 0
    %385 = vmatpush1.bf16.msra.mxu0 0
    %386 = vmatprep.subr.bf16.mxu0 0
    %387 = vmatpush1.bf16.msra.mxu0 0
    %388 = vmatprep.subr.bf16.mxu0 0
    %389 = vmatpush1.bf16.msra.mxu0 0
    %390 = vmatprep.subr.bf16.mxu0 0
    %391 = vmatpush1.bf16.msra.mxu0 0
    %392 = vmatprep.subr.bf16.mxu0 0
    %393 = vmatpush1.bf16.msra.mxu0 0
    %394 = vmatprep.subr.bf16.mxu0 0
    %395 = vmatpush1.bf16.msra.mxu0 0
    %396 = vmatprep.subr.bf16.mxu0 0
    %397 = vmatpush1.bf16.msra.mxu0 0
    %398 = vmatprep.subr.bf16.mxu0 0
    %399 = vmatpush1.bf16.msra.mxu0 0
    %400 = vmatprep.subr.bf16.mxu0 0
    %401 = vmatpush1.bf16.msra.mxu0 0
    %402 = vmatprep.subr.bf16.mxu0 0
    %403 = vmatpush1.bf16.msra.mxu0 0
    %404 = vmatprep.subr.bf16.mxu0 0
    %405 = vmatpush1.bf16.msra.mxu0 0
    %406 = vmatprep.subr.bf16.mxu0 0
    %407 = vmatpush1.bf16.msra.mxu0 0
    %408 = vmatprep.subr.bf16.mxu0 0
    %409 = vmatpush1.bf16.msra.mxu0 0
    %410 = vmatprep.subr.bf16.mxu0 0
    %411 = vmatpush1.bf16.msra.mxu0 0
    %412 = vmatprep.mubr.bf16.mxu0 0
    %413 = vmatmul.mubr.bf16.gmra.mrb[0].mxu0 %v378
    %v414 = vpop.f32.mrb[0].mxu0
    %v415 = vadd.f32 0.0, %v414
    %v416 = vpop.f32.mrb[0].mxu0
    %v417 = vpop.f32.mrb[0].mxu0
    %v418 = vpop.f32.mrb[0].mxu0
    %419 = vdwg.mxu0
    %v421 = vrot.slane %v415, 5
    %v423 = vadd.f32 %v98, %v421
    %v424 = vxor.u32 %v423, 2147483648
    %v425 = vmul.f32 %v424, 1.442695
    %v426 = vpow.pop %v425
    %v427 = vadd.f32 %v426, 1.0
    %v428 = vrcp.pop %v427
    %v429 = vmul.f32 1.0, %v428
    %v430 = vadd.f32 %v415, %v178
    %v432 = vrot.slane %v430, 5
    %433 = vrot.lane.b32.xlu0 %v432, 64
    %v434 = vpop.permute.xlu0 %433
    %v436 = vmul.f32 %v429, %v434
    %438 = vrot.lane.b32.xlu0 %v436, 64
    %v439 = vpop.permute.xlu0 %438
    %v441 = vadd.f32 %v98, %v439
    %v442 = vtanh.pop %v441
    %v443 = vsub.f32 1.0, %v429
    %445 = vrot.lane.b32.xlu0 %v442, 96
    %v446 = vpop.permute.xlu0 %445
    %v448 = vmul.f32 %v443, %v446
    %v450 = vrot.slane %v371, 7
    %v452 = vmul.f32 %v429, %v450
    %v453 = vadd.f32 %v448, %v452
    %v454 = vpack.c.bf16 %v453, %v453
    %v456 = vshrl.u32 %v454, 16
    %v458 = vrot.slane %v456, 1
    %459 = vrot.lane.b32.xlu0 %v458, 96
    %v460 = vpop.permute.xlu0 %459
    %v462 = vsel %vm59, %v460, 0
    %464 = vmatprep.subr.bf16.mxu0 0
    %465 = vmatpush1.bf16.msra.mxu0 %v118
    %466 = vmatprep.subr.bf16.mxu0 0
    %467 = vmatpush1.bf16.msra.mxu0 %v119
    %468 = vmatprep.subr.bf16.mxu0 0
    %469 = vmatpush1.bf16.msra.mxu0 0
    %470 = vmatprep.subr.bf16.mxu0 0
    %471 = vmatpush1.bf16.msra.mxu0 0
    %472 = vmatprep.subr.bf16.mxu0 0
    %473 = vmatpush1.bf16.msra.mxu0 0
    %474 = vmatprep.subr.bf16.mxu0 0
    %475 = vmatpush1.bf16.msra.mxu0 0
    %476 = vmatprep.subr.bf16.mxu0 0
    %477 = vmatpush1.bf16.msra.mxu0 0
    %478 = vmatprep.subr.bf16.mxu0 0
    %479 = vmatpush1.bf16.msra.mxu0 0
    %480 = vmatprep.subr.bf16.mxu0 0
    %481 = vmatpush1.bf16.msra.mxu0 0
    %482 = vmatprep.subr.bf16.mxu0 0
    %483 = vmatpush1.bf16.msra.mxu0 0
    %484 = vmatprep.subr.bf16.mxu0 0
    %485 = vmatpush1.bf16.msra.mxu0 0
    %486 = vmatprep.subr.bf16.mxu0 0
    %487 = vmatpush1.bf16.msra.mxu0 0
    %488 = vmatprep.subr.bf16.mxu0 0
    %489 = vmatpush1.bf16.msra.mxu0 0
    %490 = vmatprep.subr.bf16.mxu0 0
    %491 = vmatpush1.bf16.msra.mxu0 0
    %492 = vmatprep.subr.bf16.mxu0 0
    %493 = vmatpush1.bf16.msra.mxu0 0
    %494 = vmatprep.subr.bf16.mxu0 0
    %495 = vmatpush1.bf16.msra.mxu0 0
    %496 = vmatprep.mubr.bf16.mxu0 0
    %497 = vmatmul.mubr.bf16.gmra.mrb[0].mxu0 %v462
    %v498 = vpop.f32.mrb[0].mxu0
    %v499 = vadd.f32 0.0, %v498
    %v500 = vpop.f32.mrb[0].mxu0
    %v501 = vpop.f32.mrb[0].mxu0
    %v502 = vpop.f32.mrb[0].mxu0
    %503 = vdwg.mxu0
    %v505 = vrot.slane %v499, 4
    %v507 = vadd.f32 %v98, %v505
    %v508 = vxor.u32 %v507, 2147483648
    %v509 = vmul.f32 %v508, 1.442695
    %v510 = vpow.pop %v509
    %v511 = vadd.f32 %v510, 1.0
    %v512 = vrcp.pop %v511
    %v513 = vmul.f32 1.0, %v512
    %v514 = vadd.f32 %v499, %v178
    %v516 = vrot.slane %v514, 4
    %517 = vrot.lane.b32.xlu0 %v516, 64
    %v518 = vpop.permute.xlu0 %517
    %v520 = vmul.f32 %v513, %v518
    %522 = vrot.lane.b32.xlu0 %v520, 64
    %v523 = vpop.permute.xlu0 %522
    %v525 = vadd.f32 %v98, %v523
    %v526 = vtanh.pop %v525
    %v527 = vsub.f32 1.0, %v513
    %529 = vrot.lane.b32.xlu0 %v526, 96
    %v530 = vpop.permute.xlu0 %529
    %v532 = vmul.f32 %v527, %v530
    %v534 = vrot.slane %v453, 7
    %v536 = vmul.f32 %v513, %v534
    %v537 = vadd.f32 %v532, %v536
    %v538 = vpack.c.bf16 %v537, %v537
    %v540 = vrot.slane %v538, 2
    %541 = vrot.lane.b32.xlu0 %v540, 96
    %v542 = vpop.permute.xlu0 %541
    %v544 = vsel %vm59, %v542, 0
    %546 = vmatprep.subr.bf16.mxu0 0
    %547 = vmatpush1.bf16.msra.mxu0 %v118
    %548 = vmatprep.subr.bf16.mxu0 0
    %549 = vmatpush1.bf16.msra.mxu0 %v119
    %550 = vmatprep.subr.bf16.mxu0 0
    %551 = vmatpush1.bf16.msra.mxu0 0
    %552 = vmatprep.subr.bf16.mxu0 0
    %553 = vmatpush1.bf16.msra.mxu0 0
    %554 = vmatprep.subr.bf16.mxu0 0
    %555 = vmatpush1.bf16.msra.mxu0 0
    %556 = vmatprep.subr.bf16.mxu0 0
    %557 = vmatpush1.bf16.msra.mxu0 0
    %558 = vmatprep.subr.bf16.mxu0 0
    %559 = vmatpush1.bf16.msra.mxu0 0
    %560 = vmatprep.subr.bf16.mxu0 0
    %561 = vmatpush1.bf16.msra.mxu0 0
    %562 = vmatprep.subr.bf16.mxu0 0
    %563 = vmatpush1.bf16.msra.mxu0 0
    %564 = vmatprep.subr.bf16.mxu0 0
    %565 = vmatpush1.bf16.msra.mxu0 0
    %566 = vmatprep.subr.bf16.mxu0 0
    %567 = vmatpush1.bf16.msra.mxu0 0
    %568 = vmatprep.subr.bf16.mxu0 0
    %569 = vmatpush1.bf16.msra.mxu0 0
    %570 = vmatprep.subr.bf16.mxu0 0
    %571 = vmatpush1.bf16.msra.mxu0 0
    %572 = vmatprep.subr.bf16.mxu0 0
    %573 = vmatpush1.bf16.msra.mxu0 0
    %574 = vmatprep.subr.bf16.mxu0 0
    %575 = vmatpush1.bf16.msra.mxu0 0
    %576 = vmatprep.subr.bf16.mxu0 0
    %577 = vmatpush1.bf16.msra.mxu0 0
    %578 = vmatprep.mubr.bf16.mxu0 0
    %579 = vmatmul.mubr.bf16.gmra.mrb[0].mxu0 %v544
    %v580 = vpop.f32.mrb[0].mxu0
    %v581 = vadd.f32 0.0, %v580
    %v582 = vpop.f32.mrb[0].mxu0
    %v583 = vpop.f32.mrb[0].mxu0
    %v584 = vpop.f32.mrb[0].mxu0
    %585 = vdwg.mxu0
    %v587 = vrot.slane %v581, 3
    %v589 = vadd.f32 %v98, %v587
    %v590 = vxor.u32 %v589, 2147483648
    %v591 = vmul.f32 %v590, 1.442695
    %v592 = vpow.pop %v591
    %v593 = vadd.f32 %v592, 1.0
    %v594 = vrcp.pop %v593
    %v595 = vmul.f32 1.0, %v594
    %v596 = vadd.f32 %v581, %v178
    %v598 = vrot.slane %v596, 3
    %599 = vrot.lane.b32.xlu0 %v598, 64
    %v600 = vpop.permute.xlu0 %599
    %v602 = vmul.f32 %v595, %v600
    %604 = vrot.lane.b32.xlu0 %v602, 64
    %v605 = vpop.permute.xlu0 %604
    %v607 = vadd.f32 %v98, %v605
    %v608 = vtanh.pop %v607
    %v609 = vsub.f32 1.0, %v595
    %611 = vrot.lane.b32.xlu0 %v608, 96
    %v612 = vpop.permute.xlu0 %611
    %v614 = vmul.f32 %v609, %v612
    %v616 = vrot.slane %v537, 7
    %v618 = vmul.f32 %v595, %v616
    %v619 = vadd.f32 %v614, %v618
    %v620 = vpack.c.bf16 %v619, %v619
    %v622 = vshrl.u32 %v620, 16
    %v624 = vrot.slane %v622, 2
    %625 = vrot.lane.b32.xlu0 %v624, 96
    %v626 = vpop.permute.xlu0 %625
    %v628 = vsel %vm59, %v626, 0
    %630 = vmatprep.subr.bf16.mxu0 0
    %631 = vmatpush1.bf16.msra.mxu0 %v118
    %632 = vmatprep.subr.bf16.mxu0 0
    %633 = vmatpush1.bf16.msra.mxu0 %v119
    %634 = vmatprep.subr.bf16.mxu0 0
    %635 = vmatpush1.bf16.msra.mxu0 0
    %636 = vmatprep.subr.bf16.mxu0 0
    %637 = vmatpush1.bf16.msra.mxu0 0
    %638 = vmatprep.subr.bf16.mxu0 0
    %639 = vmatpush1.bf16.msra.mxu0 0
    %640 = vmatprep.subr.bf16.mxu0 0
    %641 = vmatpush1.bf16.msra.mxu0 0
    %642 = vmatprep.subr.bf16.mxu0 0
    %643 = vmatpush1.bf16.msra.mxu0 0
    %644 = vmatprep.subr.bf16.mxu0 0
    %645 = vmatpush1.bf16.msra.mxu0 0
    %646 = vmatprep.subr.bf16.mxu0 0
    %647 = vmatpush1.bf16.msra.mxu0 0
    %648 = vmatprep.subr.bf16.mxu0 0
    %649 = vmatpush1.bf16.msra.mxu0 0
    %650 = vmatprep.subr.bf16.mxu0 0
    %651 = vmatpush1.bf16.msra.mxu0 0
    %652 = vmatprep.subr.bf16.mxu0 0
    %653 = vmatpush1.bf16.msra.mxu0 0
    %654 = vmatprep.subr.bf16.mxu0 0
    %655 = vmatpush1.bf16.msra.mxu0 0
    %656 = vmatprep.subr.bf16.mxu0 0
    %657 = vmatpush1.bf16.msra.mxu0 0
    %658 = vmatprep.subr.bf16.mxu0 0
    %659 = vmatpush1.bf16.msra.mxu0 0
    %660 = vmatprep.subr.bf16.mxu0 0
    %661 = vmatpush1.bf16.msra.mxu0 0
    %662 = vmatprep.mubr.bf16.mxu0 0
    %663 = vmatmul.mubr.bf16.gmra.mrb[0].mxu0 %v628
    %v664 = vpop.f32.mrb[0].mxu0
    %v665 = vadd.f32 0.0, %v664
    %v666 = vpop.f32.mrb[0].mxu0
    %v667 = vpop.f32.mrb[0].mxu0
    %v668 = vpop.f32.mrb[0].mxu0
    %669 = vdwg.mxu0
    %v671 = vrot.slane %v665, 2
    %v673 = vadd.f32 %v98, %v671
    %v674 = vxor.u32 %v673, 2147483648
    %v675 = vmul.f32 %v674, 1.442695
    %v676 = vpow.pop %v675
    %v677 = vadd.f32 %v676, 1.0
    %v678 = vrcp.pop %v677
    %v679 = vmul.f32 1.0, %v678
    %v680 = vadd.f32 %v665, %v178
    %v682 = vrot.slane %v680, 2
    %683 = vrot.lane.b32.xlu0 %v682, 64
    %v684 = vpop.permute.xlu0 %683
    %v686 = vmul.f32 %v679, %v684
    %688 = vrot.lane.b32.xlu0 %v686, 64
    %v689 = vpop.permute.xlu0 %688
    %v691 = vadd.f32 %v98, %v689
    %v692 = vtanh.pop %v691
    %v693 = vsub.f32 1.0, %v679
    %695 = vrot.lane.b32.xlu0 %v692, 96
    %v696 = vpop.permute.xlu0 %695
    %v698 = vmul.f32 %v693, %v696
    %v700 = vrot.slane %v619, 7
    %v702 = vmul.f32 %v679, %v700
    %v703 = vadd.f32 %v698, %v702
    %v704 = vpack.c.bf16 %v703, %v703
    %v706 = vrot.slane %v704, 3
    %707 = vrot.lane.b32.xlu0 %v706, 96
    %v708 = vpop.permute.xlu0 %707
    %v710 = vsel %vm59, %v708, 0
    %712 = vmatprep.subr.bf16.mxu0 0
    %713 = vmatpush1.bf16.msra.mxu0 %v118
    %714 = vmatprep.subr.bf16.mxu0 0
    %715 = vmatpush1.bf16.msra.mxu0 %v119
    %716 = vmatprep.subr.bf16.mxu0 0
    %717 = vmatpush1.bf16.msra.mxu0 0
    %718 = vmatprep.subr.bf16.mxu0 0
    %719 = vmatpush1.bf16.msra.mxu0 0
    %720 = vmatprep.subr.bf16.mxu0 0
    %721 = vmatpush1.bf16.msra.mxu0 0
    %722 = vmatprep.subr.bf16.mxu0 0
    %723 = vmatpush1.bf16.msra.mxu0 0
    %724 = vmatprep.subr.bf16.mxu0 0
    %725 = vmatpush1.bf16.msra.mxu0 0
    %726 = vmatprep.subr.bf16.mxu0 0
    %727 = vmatpush1.bf16.msra.mxu0 0
    %728 = vmatprep.subr.bf16.mxu0 0
    %729 = vmatpush1.bf16.msra.mxu0 0
    %730 = vmatprep.subr.bf16.mxu0 0
    %731 = vmatpush1.bf16.msra.mxu0 0
    %732 = vmatprep.subr.bf16.mxu0 0
    %733 = vmatpush1.bf16.msra.mxu0 0
    %734 = vmatprep.subr.bf16.mxu0 0
    %735 = vmatpush1.bf16.msra.mxu0 0
    %736 = vmatprep.subr.bf16.mxu0 0
    %737 = vmatpush1.bf16.msra.mxu0 0
    %738 = vmatprep.subr.bf16.mxu0 0
    %739 = vmatpush1.bf16.msra.mxu0 0
    %740 = vmatprep.subr.bf16.mxu0 0
    %741 = vmatpush1.bf16.msra.mxu0 0
    %742 = vmatprep.subr.bf16.mxu0 0
    %743 = vmatpush1.bf16.msra.mxu0 0
    %744 = vmatprep.mubr.bf16.mxu0 0
    %745 = vmatmul.mubr.bf16.gmra.mrb[0].mxu0 %v710
    %v746 = vpop.f32.mrb[0].mxu0
    %v747 = vadd.f32 0.0, %v746
    %v748 = vpop.f32.mrb[0].mxu0
    %v749 = vpop.f32.mrb[0].mxu0
    %v750 = vpop.f32.mrb[0].mxu0
    %751 = vdwg.mxu0
    %v753 = vrot.slane %v747, 1
    %v755 = vadd.f32 %v98, %v753
    %v756 = vxor.u32 %v755, 2147483648
    %v757 = vmul.f32 %v756, 1.442695
    %v758 = vpow.pop %v757
    %v759 = vadd.f32 %v758, 1.0
    %v760 = vrcp.pop %v759
    %v761 = vmul.f32 1.0, %v760
    %v762 = vadd.f32 %v747, %v178
    %v764 = vrot.slane %v762, 1
    %765 = vrot.lane.b32.xlu0 %v764, 64
    %v766 = vpop.permute.xlu0 %765
    %v768 = vmul.f32 %v761, %v766
    %770 = vrot.lane.b32.xlu0 %v768, 64
    %v771 = vpop.permute.xlu0 %770
    %v773 = vadd.f32 %v98, %v771
    %v774 = vtanh.pop %v773
    %v775 = vsub.f32 1.0, %v761
    %777 = vrot.lane.b32.xlu0 %v774, 96
    %v778 = vpop.permute.xlu0 %777
    %v780 = vmul.f32 %v775, %v778
    %v782 = vrot.slane %v703, 7
    %v784 = vmul.f32 %v761, %v782
    %v785 = vadd.f32 %v780, %v784
    %vm786 = vcmask 1040384
    %v787 = vsel %vm786, %v207, %v288
    %vm788 = vcmask 1041408
    %v789 = vsel %vm788, %v787, %v371
    %vm790 = vcmask 1042432
    %v791 = vsel %vm790, %v789, %v453
    %vm792 = vcmask 1043456
    %v793 = vsel %vm792, %v791, %v537
    %vm794 = vcmask 1044480
    %v795 = vsel %vm794, %v793, %v619
    %vm796 = vcmask 1045504
    %v797 = vsel %vm796, %v795, %v703
    %vm798 = vcmask 1046528
    %v799 = vsel %vm798, %v797, %v785
    %v800 = vpack.c.bf16 %v799, %v799
    %v801 = vld [vmem:[%s6] sm:$0xf]
    %v802 = vld [vmem:[%s6 + $0x4] sm:$0xf]
    %v803 = vld [vmem:[%s6 + $0x8] sm:$0xf]
    %v804 = vld [vmem:[%s6 + $0xc] sm:$0xf]
    %v805 = vld [vmem:[%s7] sm:$0x1]
    %v807 = vlaneseq
    %v808 = vshrl.u32 %v807, 7
    %v809 = vsub.s32 0, %v808
    %v810 = vrot.slane %v805, %v809
    %813 = vrot.lane.b32.xlu0 %v800, 96
    %v814 = vpop.permute.xlu0 %813
    %v819 = vunpack.c.l.b16 %v801
    %v820 = vunpack.c.l.b16 %v802
    %v821 = vunpack.c.l.b16 %v803
    %v822 = vunpack.c.l.b16 %v804
    %v823 = vpack.c.b16 %v820, %v819
    %v824 = vpack.c.b16 %v822, %v821
    %v828 = vsel %vm59, %v814, 0
    %830 = vmatprep.subr.bf16.mxu0 0
    %831 = vmatpush1.bf16.msra.mxu0 %v823
    %832 = vmatprep.subr.bf16.mxu0 0
    %833 = vmatpush1.bf16.msra.mxu0 %v824
    %834 = vmatprep.subr.bf16.mxu0 0
    %835 = vmatpush1.bf16.msra.mxu0 0
    %836 = vmatprep.subr.bf16.mxu0 0
    %837 = vmatpush1.bf16.msra.mxu0 0
    %838 = vmatprep.subr.bf16.mxu0 0
    %839 = vmatpush1.bf16.msra.mxu0 0
    %840 = vmatprep.subr.bf16.mxu0 0
    %841 = vmatpush1.bf16.msra.mxu0 0
    %842 = vmatprep.subr.bf16.mxu0 0
    %843 = vmatpush1.bf16.msra.mxu0 0
    %844 = vmatprep.subr.bf16.mxu0 0
    %845 = vmatpush1.bf16.msra.mxu0 0
    %846 = vmatprep.subr.bf16.mxu0 0
    %847 = vmatpush1.bf16.msra.mxu0 0
    %848 = vmatprep.subr.bf16.mxu0 0
    %849 = vmatpush1.bf16.msra.mxu0 0
    %850 = vmatprep.subr.bf16.mxu0 0
    %851 = vmatpush1.bf16.msra.mxu0 0
    %852 = vmatprep.subr.bf16.mxu0 0
    %853 = vmatpush1.bf16.msra.mxu0 0
    %854 = vmatprep.subr.bf16.mxu0 0
    %855 = vmatpush1.bf16.msra.mxu0 0
    %856 = vmatprep.subr.bf16.mxu0 0
    %857 = vmatpush1.bf16.msra.mxu0 0
    %858 = vmatprep.subr.bf16.mxu0 0
    %859 = vmatpush1.bf16.msra.mxu0 0
    %860 = vmatprep.subr.bf16.mxu0 0
    %861 = vmatpush1.bf16.msra.mxu0 0
    %862 = vmatprep.mubr.bf16.mxu0 0
    %863 = vmatmul.mubr.bf16.gmra.mrb[0].mxu0 %v828
    %v864 = vpop.f32.mrb[0].mxu0
    %v865 = vadd.f32 %v810, %v864
    %v866 = vpop.f32.mrb[0].mxu0
    %v867 = vpop.f32.mrb[0].mxu0
    %v868 = vpop.f32.mrb[0].mxu0
    %869 = vdwg.mxu0
    %870 = vmax.xlane.f32.xlu0 %v865
    %v871 = vpop.xlane.xlu0 %870
    %v872 = vsub.f32 %v865, %v871
    %v873 = vmul.f32 %v872, 1.442695
    %v874 = vpow.pop %v873
    %875 = vadd.xlane.f32.xlu0 %v874
    %v876 = vpop.xlane.xlu0 %875
    %v877 = vlog2.pop %v876
    %v878 = vmul.f32 %v877, 0.6931472
    %v879 = vsub.f32 %v872, %v878
    %880 = vst [vmem:[#allocation2] sm:$0xff] %v879
    %882 = vrot.lane.b32.xlu0 %v785, 96
    %v883 = vpop.permute.xlu0 %882
    %vm885 = vcmask 261127
    %886 = vst.msk [vmem:[#allocation4 - $0x7] sm:$0x80] %vm885, %v883
    // Predicated region
    $region34: #{decoder_rnn_decode.1} parent=1 // pred_check
      _
    $region35: #{decoder_rnn_decode.1} parent=1 // pred_check_branch
      %888 = sbr.rel (0) target = $region37
    $region36: #{decoder_rnn_decode.1} parent=1 // pred_region
      %s890 = ssub.s32 128, 128
      %891 = vsyncadd [#allocation3], %s890
      %s893 = sshll.u32 [#allocation2], 4
      %s894 = int_to_ptr.vmem [resolvable:$true] %s893
      %896 = dma.vmem_to_hbm [thread:$0]  %s894, 128, %s8, [#allocation3]
    $region37: #{decoder_rnn_decode.1} parent=1 // pred_fallthru
      _
    // Predicated region
    $region38: #{decoder_rnn_decode.1} parent=1 // pred_check
      _
    $region39: #{decoder_rnn_decode.1} parent=1 // pred_check_branch
      %898 = sbr.rel (0) target = $region41
    $region40: #{decoder_rnn_decode.1} parent=1 // pred_region
      %s900 = ssub.s32 16, 16
      %901 = vsyncadd [#allocation5], %s900
      %s903 = sshll.u32 [#allocation4], 4
      %s904 = int_to_ptr.vmem [resolvable:$true] %s903
      %906 = dma.vmem_to_hbm [thread:$0]  %s904, 16, %s9, [#allocation5]
    $region41: #{decoder_rnn_decode.1} parent=1 // pred_fallthru
      _
    // Predicated region
    $region42: #{decoder_rnn_decode.1} parent=1 // pred_check
      _
    $region43: #{decoder_rnn_decode.1} parent=1 // pred_check_branch
      %908 = sbr.rel (0) target = $region45
    $region44: #{decoder_rnn_decode.1} parent=1 // pred_region
      %909 = dma.done [#allocation3], 128
    $region45: #{decoder_rnn_decode.1} parent=1 // pred_fallthru
      _
    // Predicated region
    $region46: #{decoder_rnn_decode.1} parent=1 // pred_check
      _
    $region47: #{decoder_rnn_decode.1} parent=1 // pred_check_branch
      %911 = sbr.rel (0) target = $region49
    $region48: #{decoder_rnn_decode.1} parent=1 // pred_region
      %912 = dma.done [#allocation5], 16
    $region49: #{decoder_rnn_decode.1} parent=1 // pred_fallthru
      _
    %913 = vsyncpa [#allocation3], 1
    %914 = vsyncpa [#allocation5], 1

</llo_original>
